<compile_context>
chip_gen: v7x
topology: tpu7x:2x2x1
jax: 0.10.0
libtpu: 0.0.40
codegen_flags: <defaults>
</compile_context>

<pallas_src>
from functools import partial

import jax
import jax.numpy as jnp
from jax.experimental import pallas as pl
from jax.experimental.pallas import tpu as pltpu

PAD_RIGHT = 8  # matches nn.ReplicationPad1d((0, 8))


def _patching_kernel(x_ref, o_ref, xpad_ref, *, patch_len, stride, T, T_p):
    # x_ref:    (Bt, T, C)              time-major input block (fed as given, no wrapper transpose)
    # o_ref:    (Bt, C, patch_len, T_p) patch-offset-major output block (lane dim = T_p)
    # xpad_ref: (Bt, T + PAD_RIGHT, C)  VMEM scratch: replication-padded series
    Bt, _, C = x_ref.shape

    x = x_ref[...]                                              # (Bt, T, C)
    xpad_ref[:, :T, :] = x
    xpad_ref[:, T:, :] = jnp.broadcast_to(x[:, T - 1:T, :], (Bt, PAD_RIGHT, C))

    # Loop over the patch offset (small, static) -- NOT over T_p.
    for p in range(patch_len):
        # sublane-strided window: time steps p, p+stride, ..., p+(T_p-1)*stride
        win = xpad_ref[:, pl.ds(p, T_p, stride=stride), :]      # (Bt, T_p, C)
        # one full-width (T_p lanes) store per offset p
        o_ref[:, :, p, :] = jnp.swapaxes(win, 1, 2)             # (Bt, C, T_p)


def _pick_batch_block(B, per_batch_bytes, max_block_bytes=4 << 20):
    """Largest divisor of B whose block fits the byte budget; keep grid >= 2 if B >= 2."""
    best = 1
    for bt in range(1, B + 1):
        if B % bt:
            continue
        if bt * per_batch_bytes > max_block_bytes:
            continue
        if B >= 2 and (B // bt) < 2:
            continue  # leave at least 2 grid steps so both v7x TCs are busy
        best = bt
    return best


def patching(x, patch_len, stride, enable_channel_independence=True, *, batch_block=None):
    """x: (B, T, C) array (same axis convention as the PyTorch module input)."""
    B, T, C = x.shape
    T_p = (T + PAD_RIGHT - patch_len) // stride + 1

    itemsize = jnp.dtype(x.dtype).itemsize
    # double-buffered in/out blocks + single-buffered scratch, per batch element
    per_batch_bytes = itemsize * (2 * (T * C + C * patch_len * T_p) + (T + PAD_RIGHT) * C)
    Bt = batch_block if batch_block is not None else _pick_batch_block(B, per_batch_bytes)
    assert B % Bt == 0
    grid = (B // Bt,)

    kern = partial(_patching_kernel, patch_len=patch_len, stride=stride, T=T, T_p=T_p)
    out = pl.pallas_call(
        kern,
        out_shape=jax.ShapeDtypeStruct((B, C, patch_len, T_p), x.dtype),
        grid=grid,
        in_specs=[pl.BlockSpec((Bt, T, C), lambda b: (b, 0, 0))],
        out_specs=pl.BlockSpec((Bt, C, patch_len, T_p), lambda b: (b, 0, 0, 0)),
        scratch_shapes=[pltpu.VMEM((Bt, T + PAD_RIGHT, C), x.dtype)],
        compiler_params=pltpu.CompilerParams(
            dimension_semantics=("parallel",),
            vmem_limit_bytes=32 * 1024 * 1024,
        ),
    )(x)

    # Layout glue on the kernel result (cheap reorders, no recompute).
    if enable_channel_independence:
        # (B, C, P, T_p) -> (B, C, T_p, P) -> (B*C, T_p, P)
        return jnp.transpose(out, (0, 1, 3, 2)).reshape(B * C, T_p, patch_len)
    else:
        # (B, C, P, T_p) -> (B, T_p, C, P) -> (B, T_p, C*P)
        return jnp.transpose(out, (0, 3, 1, 2)).reshape(B, T_p, C * patch_len)


def _reference_patching(x, patch_len, stride, enable_channel_independence=True):
    """Pure-JAX reference mirroring the PyTorch module exactly."""
    B, T, C = x.shape
    xt = jnp.transpose(x, (0, 2, 1))                       # B C T
    pad = jnp.repeat(xt[:, :, -1:], PAD_RIGHT, axis=-1)    # replication pad right
    xp = jnp.concatenate([xt, pad], axis=-1)               # B C (T+8)
    T_p = (T + PAD_RIGHT - patch_len) // stride + 1
    patches = jnp.stack(
        [xp[:, :, t * stride:t * stride + patch_len] for t in range(T_p)], axis=2
    )                                                      # B C T_p P
    if enable_channel_independence:
        return patches.reshape(B * C, T_p, patch_len)
    return jnp.transpose(patches, (0, 2, 1, 3)).reshape(B, T_p, C * patch_len)


if __name__ == "__main__":
    B, T, C = 2, 16, 4
    patch_len, stride = 8, 4

    key = jax.random.PRNGKey(0)
    x = jax.random.normal(key, (B, T, C), dtype=jnp.float32)

    # channel-independent variant (default in the module)
    out_ci = jax.block_until_ready(patching(x, patch_len, stride, True))
    ref_ci = _reference_patching(x, patch_len, stride, True)
    T_p = (T + PAD_RIGHT - patch_len) // stride + 1
    assert out_ci.shape == (B * C, T_p, patch_len)
    assert jnp.allclose(out_ci, ref_ci)

    # non-channel-independent variant
    out_mix = jax.block_until_ready(patching(x, patch_len, stride, False))
    ref_mix = _reference_patching(x, patch_len, stride, False)
    assert out_mix.shape == (B, T_p, C * patch_len)
    assert jnp.allclose(out_mix, ref_mix)

    # a stride that does not divide patch_len (exercises the general strided path)
    out_g = jax.block_until_ready(patching(x, 8, 3, True))
    ref_g = _reference_patching(x, 8, 3, True)
    assert out_g.shape == ref_g.shape
    assert jnp.allclose(out_g, ref_g)

    print("KERNEL_OK")
</pallas_src>

<mosaic_0001>
module attributes {stable_mosaic.version = 11 : i64} {
  func.func @_patching_kernel(%arg0: i32, %arg1: memref<1x16x4xf32, #tpu.memory_space<vmem>>, %arg2: memref<1x4x8x5xf32, #tpu.memory_space<vmem>>, %arg3: memref<1x24x4xf32, #tpu.memory_space<vmem>>) attributes {dimension_semantics = [#tpu.dimension_semantics<parallel>], iteration_bounds = array<i64: 2>, scalar_prefetch = 0 : i64, scratch_operands = 1 : i64, tpu.core_type = #tpu.core_type<tc>, window_params = [{transform_indices = @transform_0, window_bounds = array<i64: 1, 16, 4>}, {transform_indices = @transform_1, window_bounds = array<i64: 1, 4, 8, 5>}]} {
    %c0 = arith.constant 0 : index
    %c0_0 = arith.constant 0 : index
    %c0_1 = arith.constant 0 : index
    %0 = vector.load %arg1[%c0, %c0_0, %c0_1] : memref<1x16x4xf32, #tpu.memory_space<vmem>>, vector<1x16x4xf32>
    %c0_2 = arith.constant 0 : index
    %c0_3 = arith.constant 0 : index
    %c0_4 = arith.constant 0 : index
    %1 = vector.load %arg3[%c0_2, %c0_3, %c0_4] : memref<1x24x4xf32, #tpu.memory_space<vmem>>, vector<1x16x4xf32>
    tpu.vector_store %arg3[%c0_2, %c0_3, %c0_4], %0 {strides = array<i32>} : memref<1x24x4xf32, #tpu.memory_space<vmem>>, vector<1x16x4xf32>,
    %2 = vector.extract_strided_slice %0 {offsets = [0, 15, 0], sizes = [1, 1, 4], strides = [1, 1, 1]} : vector<1x16x4xf32> to vector<1x1x4xf32>
    %3 = vector.shape_cast %2 : vector<1x1x4xf32> to vector<1x1x4xf32>
    %4 = vector.broadcast %3 : vector<1x1x4xf32> to vector<1x8x4xf32>
    %c0_5 = arith.constant 0 : index
    %c16 = arith.constant 16 : index
    %c0_6 = arith.constant 0 : index
    %5 = vector.load %arg3[%c0_5, %c16, %c0_6] : memref<1x24x4xf32, #tpu.memory_space<vmem>>, vector<1x8x4xf32>
    tpu.vector_store %arg3[%c0_5, %c16, %c0_6], %4 {strides = array<i32>} : memref<1x24x4xf32, #tpu.memory_space<vmem>>, vector<1x8x4xf32>,
    %c0_7 = arith.constant 0 : index
    %c0_8 = arith.constant 0 : index
    %c0_9 = arith.constant 0 : index
    %6 = tpu.strided_load %arg3[%c0_7, %c0_8, %c0_9] {strides = array<i32: 1, 4, 1>} : memref<1x24x4xf32, #tpu.memory_space<vmem>>, vector<1x5x4xf32>
    %7 = tpu.transpose %6, [0, 2, 1] : vector<1x5x4xf32> -> vector<1x4x5xf32>
    %c0_10 = arith.constant 0 : index
    %c0_11 = arith.constant 0 : index
    %c0_12 = arith.constant 0 : index
    %c0_13 = arith.constant 0 : index
    %8 = vector.load %arg2[%c0_10, %c0_11, %c0_12, %c0_13] : memref<1x4x8x5xf32, #tpu.memory_space<vmem>>, vector<1x4x1x5xf32>
    %9 = vector.shape_cast %8 : vector<1x4x1x5xf32> to vector<1x4x5xf32>
    %10 = vector.shape_cast %7 : vector<1x4x5xf32> to vector<1x4x1x5xf32>
    tpu.vector_store %arg2[%c0_10, %c0_11, %c0_12, %c0_13], %10 {strides = array<i32>} : memref<1x4x8x5xf32, #tpu.memory_space<vmem>>, vector<1x4x1x5xf32>,
    %c0_14 = arith.constant 0 : index
    %c1 = arith.constant 1 : index
    %c0_15 = arith.constant 0 : index
    %11 = tpu.strided_load %arg3[%c0_14, %c1, %c0_15] {strides = array<i32: 1, 4, 1>} : memref<1x24x4xf32, #tpu.memory_space<vmem>>, vector<1x5x4xf32>
    %12 = tpu.transpose %11, [0, 2, 1] : vector<1x5x4xf32> -> vector<1x4x5xf32>
    %c0_16 = arith.constant 0 : index
    %c0_17 = arith.constant 0 : index
    %c1_18 = arith.constant 1 : index
    %c0_19 = arith.constant 0 : index
    %13 = vector.load %arg2[%c0_16, %c0_17, %c1_18, %c0_19] : memref<1x4x8x5xf32, #tpu.memory_space<vmem>>, vector<1x4x1x5xf32>
    %14 = vector.shape_cast %13 : vector<1x4x1x5xf32> to vector<1x4x5xf32>
    %15 = vector.shape_cast %12 : vector<1x4x5xf32> to vector<1x4x1x5xf32>
    tpu.vector_store %arg2[%c0_16, %c0_17, %c1_18, %c0_19], %15 {strides = array<i32>} : memref<1x4x8x5xf32, #tpu.memory_space<vmem>>, vector<1x4x1x5xf32>,
    %c0_20 = arith.constant 0 : index
    %c2 = arith.constant 2 : index
    %c0_21 = arith.constant 0 : index
    %16 = tpu.strided_load %arg3[%c0_20, %c2, %c0_21] {strides = array<i32: 1, 4, 1>} : memref<1x24x4xf32, #tpu.memory_space<vmem>>, vector<1x5x4xf32>
    %17 = tpu.transpose %16, [0, 2, 1] : vector<1x5x4xf32> -> vector<1x4x5xf32>
    %c0_22 = arith.constant 0 : index
    %c0_23 = arith.constant 0 : index
    %c2_24 = arith.constant 2 : index
    %c0_25 = arith.constant 0 : index
    %18 = vector.load %arg2[%c0_22, %c0_23, %c2_24, %c0_25] : memref<1x4x8x5xf32, #tpu.memory_space<vmem>>, vector<1x4x1x5xf32>
    %19 = vector.shape_cast %18 : vector<1x4x1x5xf32> to vector<1x4x5xf32>
    %20 = vector.shape_cast %17 : vector<1x4x5xf32> to vector<1x4x1x5xf32>
    tpu.vector_store %arg2[%c0_22, %c0_23, %c2_24, %c0_25], %20 {strides = array<i32>} : memref<1x4x8x5xf32, #tpu.memory_space<vmem>>, vector<1x4x1x5xf32>,
    %c0_26 = arith.constant 0 : index
    %c3 = arith.constant 3 : index
    %c0_27 = arith.constant 0 : index
    %21 = tpu.strided_load %arg3[%c0_26, %c3, %c0_27] {strides = array<i32: 1, 4, 1>} : memref<1x24x4xf32, #tpu.memory_space<vmem>>, vector<1x5x4xf32>
    %22 = tpu.transpose %21, [0, 2, 1] : vector<1x5x4xf32> -> vector<1x4x5xf32>
    %c0_28 = arith.constant 0 : index
    %c0_29 = arith.constant 0 : index
    %c3_30 = arith.constant 3 : index
    %c0_31 = arith.constant 0 : index
    %23 = vector.load %arg2[%c0_28, %c0_29, %c3_30, %c0_31] : memref<1x4x8x5xf32, #tpu.memory_space<vmem>>, vector<1x4x1x5xf32>
    %24 = vector.shape_cast %23 : vector<1x4x1x5xf32> to vector<1x4x5xf32>
    %25 = vector.shape_cast %22 : vector<1x4x5xf32> to vector<1x4x1x5xf32>
    tpu.vector_store %arg2[%c0_28, %c0_29, %c3_30, %c0_31], %25 {strides = array<i32>} : memref<1x4x8x5xf32, #tpu.memory_space<vmem>>, vector<1x4x1x5xf32>,
    %c0_32 = arith.constant 0 : index
    %c4 = arith.constant 4 : index
    %c0_33 = arith.constant 0 : index
    %26 = tpu.strided_load %arg3[%c0_32, %c4, %c0_33] {strides = array<i32: 1, 4, 1>} : memref<1x24x4xf32, #tpu.memory_space<vmem>>, vector<1x5x4xf32>
    %27 = tpu.transpose %26, [0, 2, 1] : vector<1x5x4xf32> -> vector<1x4x5xf32>
    %c0_34 = arith.constant 0 : index
    %c0_35 = arith.constant 0 : index
    %c4_36 = arith.constant 4 : index
    %c0_37 = arith.constant 0 : index
    %28 = vector.load %arg2[%c0_34, %c0_35, %c4_36, %c0_37] : memref<1x4x8x5xf32, #tpu.memory_space<vmem>>, vector<1x4x1x5xf32>
    %29 = vector.shape_cast %28 : vector<1x4x1x5xf32> to vector<1x4x5xf32>
    %30 = vector.shape_cast %27 : vector<1x4x5xf32> to vector<1x4x1x5xf32>
    tpu.vector_store %arg2[%c0_34, %c0_35, %c4_36, %c0_37], %30 {strides = array<i32>} : memref<1x4x8x5xf32, #tpu.memory_space<vmem>>, vector<1x4x1x5xf32>,
    %c0_38 = arith.constant 0 : index
    %c5 = arith.constant 5 : index
    %c0_39 = arith.constant 0 : index
    %31 = tpu.strided_load %arg3[%c0_38, %c5, %c0_39] {strides = array<i32: 1, 4, 1>} : memref<1x24x4xf32, #tpu.memory_space<vmem>>, vector<1x5x4xf32>
    %32 = tpu.transpose %31, [0, 2, 1] : vector<1x5x4xf32> -> vector<1x4x5xf32>
    %c0_40 = arith.constant 0 : index
    %c0_41 = arith.constant 0 : index
    %c5_42 = arith.constant 5 : index
    %c0_43 = arith.constant 0 : index
    %33 = vector.load %arg2[%c0_40, %c0_41, %c5_42, %c0_43] : memref<1x4x8x5xf32, #tpu.memory_space<vmem>>, vector<1x4x1x5xf32>
    %34 = vector.shape_cast %33 : vector<1x4x1x5xf32> to vector<1x4x5xf32>
    %35 = vector.shape_cast %32 : vector<1x4x5xf32> to vector<1x4x1x5xf32>
    tpu.vector_store %arg2[%c0_40, %c0_41, %c5_42, %c0_43], %35 {strides = array<i32>} : memref<1x4x8x5xf32, #tpu.memory_space<vmem>>, vector<1x4x1x5xf32>,
    %c0_44 = arith.constant 0 : index
    %c6 = arith.constant 6 : index
    %c0_45 = arith.constant 0 : index
    %36 = tpu.strided_load %arg3[%c0_44, %c6, %c0_45] {strides = array<i32: 1, 4, 1>} : memref<1x24x4xf32, #tpu.memory_space<vmem>>, vector<1x5x4xf32>
    %37 = tpu.transpose %36, [0, 2, 1] : vector<1x5x4xf32> -> vector<1x4x5xf32>
    %c0_46 = arith.constant 0 : index
    %c0_47 = arith.constant 0 : index
    %c6_48 = arith.constant 6 : index
    %c0_49 = arith.constant 0 : index
    %38 = vector.load %arg2[%c0_46, %c0_47, %c6_48, %c0_49] : memref<1x4x8x5xf32, #tpu.memory_space<vmem>>, vector<1x4x1x5xf32>
    %39 = vector.shape_cast %38 : vector<1x4x1x5xf32> to vector<1x4x5xf32>
    %40 = vector.shape_cast %37 : vector<1x4x5xf32> to vector<1x4x1x5xf32>
    tpu.vector_store %arg2[%c0_46, %c0_47, %c6_48, %c0_49], %40 {strides = array<i32>} : memref<1x4x8x5xf32, #tpu.memory_space<vmem>>, vector<1x4x1x5xf32>,
    %c0_50 = arith.constant 0 : index
    %c7 = arith.constant 7 : index
    %c0_51 = arith.constant 0 : index
    %41 = tpu.strided_load %arg3[%c0_50, %c7, %c0_51] {strides = array<i32: 1, 4, 1>} : memref<1x24x4xf32, #tpu.memory_space<vmem>>, vector<1x5x4xf32>
    %42 = tpu.transpose %41, [0, 2, 1] : vector<1x5x4xf32> -> vector<1x4x5xf32>
    %c0_52 = arith.constant 0 : index
    %c0_53 = arith.constant 0 : index
    %c7_54 = arith.constant 7 : index
    %c0_55 = arith.constant 0 : index
    %43 = vector.load %arg2[%c0_52, %c0_53, %c7_54, %c0_55] : memref<1x4x8x5xf32, #tpu.memory_space<vmem>>, vector<1x4x1x5xf32>
    %44 = vector.shape_cast %43 : vector<1x4x1x5xf32> to vector<1x4x5xf32>
    %45 = vector.shape_cast %42 : vector<1x4x5xf32> to vector<1x4x1x5xf32>
    tpu.vector_store %arg2[%c0_52, %c0_53, %c7_54, %c0_55], %45 {strides = array<i32>} : memref<1x4x8x5xf32, #tpu.memory_space<vmem>>, vector<1x4x1x5xf32>,
    return
  }
  func.func @transform_0(%arg0: i32) -> (i32, i32, i32) {
    %c0_i32 = arith.constant 0 : i32
    %c0_i32_0 = arith.constant 0 : i32
    %c0_i32_1 = arith.constant 0 : i32
    return %arg0, %c0_i32, %c0_i32_0 : i32, i32, i32
  }
  func.func @transform_1(%arg0: i32) -> (i32, i32, i32, i32) {
    %c0_i32 = arith.constant 0 : i32
    %c0_i32_0 = arith.constant 0 : i32
    %c0_i32_1 = arith.constant 0 : i32
    %c0_i32_2 = arith.constant 0 : i32
    return %arg0, %c0_i32, %c0_i32_0, %c0_i32_1 : i32, i32, i32, i32
  }
}

</mosaic_0001>

<llo_original>
// kernel: tpu_custom_call.1
$region0: #{tpu_custom_call.1}
  #allocation0 [shape = 'u32[]', space=smem, size = 0x4, offset = 0x4, fixed_abs, tag = 'smem constant byte address 0x4 - core index']
  #allocation1 [shape = 'u32[144,128]{1,0:T(1,128)}', space=vmem, size = 0x12000, scoped, tag = 'internal scratch']
  #allocation2 [shape = 'f32[1,24,4]{2,1,0:T(8,128)}', space=vmem, size = 0x3000, scoped, tag = 'scratch operand']
  %s0 = inlined_call_operand.vmem [shape: f32[2,16,4], index: 0, kind: input, shape index: {}]
  %s1 = inlined_call_operand.vmem [shape: f32[2,4,8,5], index: 1, kind: output, shape index: {}]
  %s2 = sld [smem:[#allocation0]]
  $region37: #{tpu_custom_call.1} parent=0
    _
  %s4 = ssub.s32 1, %s2
  %s5 = scalar_select 0, %s4, %s2
  loop: start=0, step=1, limit=4
  $region2: #{tpu_custom_call.1} parent=0 // loop_pre_header
    _
  $region3: #{tpu_custom_call.1} parent=0 // loop_header
    %s7 = sphi 0, %s11
    %p8 = scmp.ge.s32.totalorder %s7, 4
    %s17 = sphi 0, %s19
    %s20 = sphi 0, %s17
    %s21 = sphi 0, %s20
    %s37 = sphi 0, %s21
    %s43 = sphi 0, %s45
    %s46 = sphi 0, %s43
    %s47 = sphi 0, %s46
    %s63 = sphi 0, %s47
  $region4: #{tpu_custom_call.1} parent=0 // loop_header_branch
    %10 = sbr.rel (%p8) target = $region8
  $region5: #{tpu_custom_call.1} parent=0 // loop_body
    %s12 = ssub.s32 %s7, 1
    %s13 = ssub.s32 %s7, 2
    %s14 = sadd.s32 %s7, 1
    %s15 = ssub.s32 %s7, %s14
    %p16 = scmp.eq.s32.totalorder %s15, 0
    %s18 = sadd.s32 %s17, 1
    %s19 = scalar_select %p16, %s17, %s18
    %p22 = pneg %p16
    %p23 = scmp.eq.s32.totalorder %s7, 1
    %p24 = por %p22, %p23
    %p25 = scmp.ne.s32.totalorder %s17, %s20
    %p26 = scmp.eq.s32.totalorder %s7, 0
    %p27 = por %p25, %p26
    %p28 = scmp.ne.s32.totalorder %s17, %s20
    %p29 = scmp.eq.s32.totalorder %s12, 1
    %p30 = por %p28, %p29
    %p31 = scmp.ne.s32.totalorder %s20, %s21
    %p32 = scmp.eq.s32.totalorder %s12, 0
    %p33 = por %p31, %p32
    %p34 = scmp.ne.s32.totalorder %s20, %s21
    %p35 = scmp.eq.s32.totalorder %s13, 1
    %p36 = por %p34, %p35
    %p38 = scmp.ne.s32.totalorder %s21, %s37
    %p39 = scmp.eq.s32.totalorder %s13, 0
    %p40 = por %p38, %p39
    %s41 = ssub.s32 %s7, %s14
    %p42 = scmp.eq.s32.totalorder %s41, 0
    %s44 = sadd.s32 %s43, 1
    %s45 = scalar_select %p42, %s43, %s44
    %p48 = pneg %p42
    %p49 = scmp.eq.s32.totalorder %s7, 1
    %p50 = por %p48, %p49
    %p51 = scmp.ne.s32.totalorder %s43, %s46
    %p52 = scmp.eq.s32.totalorder %s7, 0
    %p53 = por %p51, %p52
    %p54 = scmp.ne.s32.totalorder %s43, %s46
    %p55 = scmp.eq.s32.totalorder %s12, 1
    %p56 = por %p54, %p55
    %p57 = scmp.ne.s32.totalorder %s46, %s47
    %p58 = scmp.eq.s32.totalorder %s12, 0
    %p59 = por %p57, %p58
    %p60 = scmp.ne.s32.totalorder %s46, %s47
    %p61 = scmp.eq.s32.totalorder %s13, 1
    %p62 = por %p60, %p61
    %p64 = scmp.ne.s32.totalorder %s47, %s63
    %p65 = scmp.eq.s32.totalorder %s13, 0
    %p66 = por %p64, %p65
    %p67 = scmp.le.s32.totalorder 1, %s7
    %p68 = scmp.lt.s32.totalorder %s7, 3
    %p69 = pnand %p67, %p68
    %p70 = pneg %p69
    // Predicated region
    $region9: #{tpu_custom_call.1} parent=5 // pred_check
      _
    $region10: #{tpu_custom_call.1} parent=5 // pred_check_branch
      %72 = sbr.rel (%p69) target = $region12
    $region11: #{tpu_custom_call.1} parent=5 // pred_region
      %s73 = ssub.s32 %s7, 1
    $region12: #{tpu_custom_call.1} parent=5 // pred_fallthru
      _
    %p74 = scmp.lt.s32.totalorder %s7, 2
    // Predicated region
    $region13: #{tpu_custom_call.1} parent=5 // pred_check
      %p75 = pneg %p74
    $region14: #{tpu_custom_call.1} parent=5 // pred_check_branch
      %77 = sbr.rel (%p75) target = $region16
    $region15: #{tpu_custom_call.1} parent=5 // pred_region
      // Predicated region
      $region17: #{tpu_custom_call.1} parent=15 // pred_check
        %p78 = pneg %p27
      $region18: #{tpu_custom_call.1} parent=15 // pred_check_branch
        %80 = sbr.rel (%p78) target = $region20
      $region19: #{tpu_custom_call.1} parent=15 // pred_region
        %p81 = scmp.lt.s32.totalorder %s7, 1
        %s82 = scalar_select %p81, %s7, 1
        %s83 = smul.addr %s82, 2
        %s84 = smul.addr %s83, 8
        %s85 = scalar_lea.vmem %s0, %s84
      $region20: #{tpu_custom_call.1} parent=15 // pred_fallthru
        _
    $region16: #{tpu_custom_call.1} parent=5 // pred_fallthru
      _
    %p86 = scmp.le.s32.totalorder 1, %s7
    %p87 = scmp.lt.s32.totalorder %s7, 3
    %p88 = pnand %p86, %p87
    %p89 = pneg %p88
    // Predicated region
    $region21: #{tpu_custom_call.1} parent=5 // pred_check
      _
    $region22: #{tpu_custom_call.1} parent=5 // pred_check_branch
      %91 = sbr.rel (%p88) target = $region24
    $region23: #{tpu_custom_call.1} parent=5 // pred_region
      %s92 = ssub.s32 %s7, 1
      %p93 = scmp.lt.s32.totalorder %s12, 1
      %s94 = scalar_select %p93, %s12, 1
      %s95 = smul.addr %s94, 2
      %s96 = smul.addr %s95, 8
      %s97 = scalar_lea.vmem %s0, %s96
      %p98 = pneg %p33
      %p99 = pneg %p30
      %p100 = pneg %p59
      %p101 = pneg %p56
      %p102 = scmp.lt.s32.totalorder %s12, 1
      %s103 = scalar_select %p102, %s12, 1
      %s104 = smul.addr %s103, 4
      %s105 = smul.addr %s104, 8
      %s106 = scalar_lea.vmem %s1, %s105
      %p107 = scmp.lt.s32.totalorder %s12, 1
      %s108 = scalar_select %p107, %s12, 1
      %s109 = smul.addr %s108, 2
      %s110 = smul.addr %s109, 8
      %s111 = scalar_lea.vmem %s0, %s110
      %p112 = scmp.lt.s32.totalorder %s12, 1
      %s113 = scalar_select %p112, %s12, 1
      %s114 = smul.addr %s113, 4
      %s115 = smul.addr %s114, 8
      %s116 = scalar_lea.vmem %s1, %s115
      %v117 = vld [vmem:[%s111] sm:$0xff]
      %v118 = vld [vmem:[%s111 + $0x8] sm:$0xff]
      %vm119 = vcmask 31744
      %120 = vst.msk [vmem:[#allocation2] sm:$0xff] %vm119, %v117
      %121 = vst.msk [vmem:[#allocation2 + $0x8] sm:$0xff] %vm119, %v118
      %v122 = vlaneseq
      %v123 = vshrl.u32 %v122, 7
      %v124 = vsub.s32 7, %v123
      %v125 = vrot.slane %v118, %v124
      %126 = vst.msk [vmem:[#allocation2 + $0x10] sm:$0xff] %vm119, %v125
      %v127 = vld [vmem:[#allocation2] ss:$4 sm:$0x1f]
      %128 = vxpose.xlu0.b32.start [1/16] %v127, 128
      %129 = vxpose.xlu0.b32.cont [2/16] 0.0, 128
      %130 = vxpose.xlu0.b32.cont [3/16] 0.0, 128
      %131 = vxpose.xlu0.b32.cont [4/16] 0.0, 128
      %132 = vxpose.xlu0.b32.cont [5/16] 0.0, 128
      %133 = vxpose.xlu0.b32.cont [6/16] 0.0, 128
      %134 = vxpose.xlu0.b32.cont [7/16] 0.0, 128
      %135 = vxpose.xlu0.b32.cont [8/16] 0.0, 128
      %136 = vxpose.xlu0.b32.cont [9/16] 0.0, 128
      %137 = vxpose.xlu0.b32.cont [10/16] 0.0, 128
      %138 = vxpose.xlu0.b32.cont [11/16] 0.0, 128
      %139 = vxpose.xlu0.b32.cont [12/16] 0.0, 128
      %140 = vxpose.xlu0.b32.cont [13/16] 0.0, 128
      %141 = vxpose.xlu0.b32.cont [14/16] 0.0, 128
      %142 = vxpose.xlu0.b32.cont [15/16] 0.0, 128
      %143 = vxpose.xlu0.b32.end [16/16] 0.0, 128
      %v144 = vpop.trf.xlu0
      %v145 = vpop.trf.xlu0
      %v146 = vpop.trf.xlu0
      %v147 = vpop.trf.xlu0
      %v148 = vpop.trf.xlu0
      %v149 = vpop.trf.xlu0
      %v150 = vpop.trf.xlu0
      %v151 = vpop.trf.xlu0
      %v152 = vpop.trf.xlu0
      %v153 = vpop.trf.xlu0
      %v154 = vpop.trf.xlu0
      %v155 = vpop.trf.xlu0
      %v156 = vpop.trf.xlu0
      %v157 = vpop.trf.xlu0
      %v158 = vpop.trf.xlu0
      %v159 = vpop.trf.xlu0
      %v162 = vunpack.c.l.s4 1966171168
      %v163 = vunpack.c.0.s8 %v162
      %v164 = vlaneseq
      %v165 = vshrl.u32 %v164, 7
      %v166 = vsub.s32 %v163, %v165
      %v167 = vrot.slane %v144, %v166
      %v168 = vcombine.high %v167, %v167
      %v170 = vunpack.c.l.s4 1966171168
      %v171 = vunpack.c.0.s8 %v170
      %v172 = vlaneseq
      %v173 = vshrl.u32 %v172, 7
      %v174 = vsub.s32 %v171, %v173
      %v175 = vrot.slane %v167, %v174
      %v177 = vunpack.c.l.s4 1966171168
      %v178 = vunpack.c.0.s8 %v177
      %v179 = vlaneseq
      %v180 = vshrl.u32 %v179, 7
      %v181 = vsub.s32 %v178, %v180
      %v182 = vrot.slane %v168, %v181
      %v183 = vcombine.high %v175, %v175
      %v184 = vcombine.high %v182, %v182
      %vm189 = vcmask 32768
      %190 = vst.msk [vmem:[%s116] sm:$0x1] %vm189, %v175
      %191 = vst.msk [vmem:[%s116 + $0x8] sm:$0x1] %vm189, %v182
      %192 = vst.msk [vmem:[%s116 + $0x10] sm:$0x1] %vm189, %v183
      %193 = vst.msk [vmem:[%s116 + $0x18] sm:$0x1] %vm189, %v184
      %s194 = scalar_lea.vmem [#allocation2], 1
      %v195 = vld [vmem:[%s194] ss:$4 sm:$0x1f]
      %196 = vxpose.xlu0.b32.start [1/16] %v195, 128
      %197 = vxpose.xlu0.b32.cont [2/16] 0.0, 128
      %198 = vxpose.xlu0.b32.cont [3/16] 0.0, 128
      %199 = vxpose.xlu0.b32.cont [4/16] 0.0, 128
      %200 = vxpose.xlu0.b32.cont [5/16] 0.0, 128
      %201 = vxpose.xlu0.b32.cont [6/16] 0.0, 128
      %202 = vxpose.xlu0.b32.cont [7/16] 0.0, 128
      %203 = vxpose.xlu0.b32.cont [8/16] 0.0, 128
      %204 = vxpose.xlu0.b32.cont [9/16] 0.0, 128
      %205 = vxpose.xlu0.b32.cont [10/16] 0.0, 128
      %206 = vxpose.xlu0.b32.cont [11/16] 0.0, 128
      %207 = vxpose.xlu0.b32.cont [12/16] 0.0, 128
      %208 = vxpose.xlu0.b32.cont [13/16] 0.0, 128
      %209 = vxpose.xlu0.b32.cont [14/16] 0.0, 128
      %210 = vxpose.xlu0.b32.cont [15/16] 0.0, 128
      %211 = vxpose.xlu0.b32.end [16/16] 0.0, 128
      %v212 = vpop.trf.xlu0
      %v213 = vpop.trf.xlu0
      %v214 = vpop.trf.xlu0
      %v215 = vpop.trf.xlu0
      %v216 = vpop.trf.xlu0
      %v217 = vpop.trf.xlu0
      %v218 = vpop.trf.xlu0
      %v219 = vpop.trf.xlu0
      %v220 = vpop.trf.xlu0
      %v221 = vpop.trf.xlu0
      %v222 = vpop.trf.xlu0
      %v223 = vpop.trf.xlu0
      %v224 = vpop.trf.xlu0
      %v225 = vpop.trf.xlu0
      %v226 = vpop.trf.xlu0
      %v227 = vpop.trf.xlu0
      %v230 = vunpack.c.l.s4 1966171168
      %v231 = vunpack.c.0.s8 %v230
      %v232 = vlaneseq
      %v233 = vshrl.u32 %v232, 7
      %v234 = vsub.s32 %v231, %v233
      %v235 = vrot.slane %v212, %v234
      %v236 = vcombine.high %v235, %v235
      %v238 = vunpack.c.l.s4 1966171168
      %v239 = vunpack.c.0.s8 %v238
      %v240 = vlaneseq
      %v241 = vshrl.u32 %v240, 7
      %v242 = vsub.s32 %v239, %v241
      %v243 = vrot.slane %v235, %v242
      %v245 = vunpack.c.l.s4 1966171168
      %v246 = vunpack.c.0.s8 %v245
      %v247 = vlaneseq
      %v248 = vshrl.u32 %v247, 7
      %v249 = vsub.s32 %v246, %v248
      %v250 = vrot.slane %v236, %v249
      %v251 = vcombine.high %v243, %v243
      %v252 = vcombine.high %v250, %v250
      %257 = vst.msk [vmem:[%s116 + $0x1] sm:$0x1] %vm189, %v243
      %258 = vst.msk [vmem:[%s116 + $0x9] sm:$0x1] %vm189, %v250
      %259 = vst.msk [vmem:[%s116 + $0x11] sm:$0x1] %vm189, %v251
      %260 = vst.msk [vmem:[%s116 + $0x19] sm:$0x1] %vm189, %v252
      %s261 = scalar_lea.vmem [#allocation2], 2
      %v262 = vld [vmem:[%s261] ss:$4 sm:$0x1f]
      %263 = vxpose.xlu0.b32.start [1/16] %v262, 128
      %264 = vxpose.xlu0.b32.cont [2/16] 0.0, 128
      %265 = vxpose.xlu0.b32.cont [3/16] 0.0, 128
      %266 = vxpose.xlu0.b32.cont [4/16] 0.0, 128
      %267 = vxpose.xlu0.b32.cont [5/16] 0.0, 128
      %268 = vxpose.xlu0.b32.cont [6/16] 0.0, 128
      %269 = vxpose.xlu0.b32.cont [7/16] 0.0, 128
      %270 = vxpose.xlu0.b32.cont [8/16] 0.0, 128
      %271 = vxpose.xlu0.b32.cont [9/16] 0.0, 128
      %272 = vxpose.xlu0.b32.cont [10/16] 0.0, 128
      %273 = vxpose.xlu0.b32.cont [11/16] 0.0, 128
      %274 = vxpose.xlu0.b32.cont [12/16] 0.0, 128
      %275 = vxpose.xlu0.b32.cont [13/16] 0.0, 128
      %276 = vxpose.xlu0.b32.cont [14/16] 0.0, 128
      %277 = vxpose.xlu0.b32.cont [15/16] 0.0, 128
      %278 = vxpose.xlu0.b32.end [16/16] 0.0, 128
      %v279 = vpop.trf.xlu0
      %v280 = vpop.trf.xlu0
      %v281 = vpop.trf.xlu0
      %v282 = vpop.trf.xlu0
      %v283 = vpop.trf.xlu0
      %v284 = vpop.trf.xlu0
      %v285 = vpop.trf.xlu0
      %v286 = vpop.trf.xlu0
      %v287 = vpop.trf.xlu0
      %v288 = vpop.trf.xlu0
      %v289 = vpop.trf.xlu0
      %v290 = vpop.trf.xlu0
      %v291 = vpop.trf.xlu0
      %v292 = vpop.trf.xlu0
      %v293 = vpop.trf.xlu0
      %v294 = vpop.trf.xlu0
      %v297 = vunpack.c.l.s4 1966171168
      %v298 = vunpack.c.0.s8 %v297
      %v299 = vlaneseq
      %v300 = vshrl.u32 %v299, 7
      %v301 = vsub.s32 %v298, %v300
      %v302 = vrot.slane %v279, %v301
      %v303 = vcombine.high %v302, %v302
      %v305 = vunpack.c.l.s4 1966171168
      %v306 = vunpack.c.0.s8 %v305
      %v307 = vlaneseq
      %v308 = vshrl.u32 %v307, 7
      %v309 = vsub.s32 %v306, %v308
      %v310 = vrot.slane %v302, %v309
      %v312 = vunpack.c.l.s4 1966171168
      %v313 = vunpack.c.0.s8 %v312
      %v314 = vlaneseq
      %v315 = vshrl.u32 %v314, 7
      %v316 = vsub.s32 %v313, %v315
      %v317 = vrot.slane %v303, %v316
      %v318 = vcombine.high %v310, %v310
      %v319 = vcombine.high %v317, %v317
      %324 = vst.msk [vmem:[%s116 + $0x2] sm:$0x1] %vm189, %v310
      %325 = vst.msk [vmem:[%s116 + $0xa] sm:$0x1] %vm189, %v317
      %326 = vst.msk [vmem:[%s116 + $0x12] sm:$0x1] %vm189, %v318
      %327 = vst.msk [vmem:[%s116 + $0x1a] sm:$0x1] %vm189, %v319
      %s328 = scalar_lea.vmem [#allocation2], 3
      %v329 = vld [vmem:[%s328] ss:$4 sm:$0x1f]
      %330 = vxpose.xlu0.b32.start [1/16] %v329, 128
      %331 = vxpose.xlu0.b32.cont [2/16] 0.0, 128
      %332 = vxpose.xlu0.b32.cont [3/16] 0.0, 128
      %333 = vxpose.xlu0.b32.cont [4/16] 0.0, 128
      %334 = vxpose.xlu0.b32.cont [5/16] 0.0, 128
      %335 = vxpose.xlu0.b32.cont [6/16] 0.0, 128
      %336 = vxpose.xlu0.b32.cont [7/16] 0.0, 128
      %337 = vxpose.xlu0.b32.cont [8/16] 0.0, 128
      %338 = vxpose.xlu0.b32.cont [9/16] 0.0, 128
      %339 = vxpose.xlu0.b32.cont [10/16] 0.0, 128
      %340 = vxpose.xlu0.b32.cont [11/16] 0.0, 128
      %341 = vxpose.xlu0.b32.cont [12/16] 0.0, 128
      %342 = vxpose.xlu0.b32.cont [13/16] 0.0, 128
      %343 = vxpose.xlu0.b32.cont [14/16] 0.0, 128
      %344 = vxpose.xlu0.b32.cont [15/16] 0.0, 128
      %345 = vxpose.xlu0.b32.end [16/16] 0.0, 128
      %v346 = vpop.trf.xlu0
      %v347 = vpop.trf.xlu0
      %v348 = vpop.trf.xlu0
      %v349 = vpop.trf.xlu0
      %v350 = vpop.trf.xlu0
      %v351 = vpop.trf.xlu0
      %v352 = vpop.trf.xlu0
      %v353 = vpop.trf.xlu0
      %v354 = vpop.trf.xlu0
      %v355 = vpop.trf.xlu0
      %v356 = vpop.trf.xlu0
      %v357 = vpop.trf.xlu0
      %v358 = vpop.trf.xlu0
      %v359 = vpop.trf.xlu0
      %v360 = vpop.trf.xlu0
      %v361 = vpop.trf.xlu0
      %v364 = vunpack.c.l.s4 1966171168
      %v365 = vunpack.c.0.s8 %v364
      %v366 = vlaneseq
      %v367 = vshrl.u32 %v366, 7
      %v368 = vsub.s32 %v365, %v367
      %v369 = vrot.slane %v346, %v368
      %v370 = vcombine.high %v369, %v369
      %v372 = vunpack.c.l.s4 1966171168
      %v373 = vunpack.c.0.s8 %v372
      %v374 = vlaneseq
      %v375 = vshrl.u32 %v374, 7
      %v376 = vsub.s32 %v373, %v375
      %v377 = vrot.slane %v369, %v376
      %v379 = vunpack.c.l.s4 1966171168
      %v380 = vunpack.c.0.s8 %v379
      %v381 = vlaneseq
      %v382 = vshrl.u32 %v381, 7
      %v383 = vsub.s32 %v380, %v382
      %v384 = vrot.slane %v370, %v383
      %v385 = vcombine.high %v377, %v377
      %v386 = vcombine.high %v384, %v384
      %391 = vst.msk [vmem:[%s116 + $0x3] sm:$0x1] %vm189, %v377
      %392 = vst.msk [vmem:[%s116 + $0xb] sm:$0x1] %vm189, %v384
      %393 = vst.msk [vmem:[%s116 + $0x13] sm:$0x1] %vm189, %v385
      %394 = vst.msk [vmem:[%s116 + $0x1b] sm:$0x1] %vm189, %v386
      %s395 = scalar_lea.vmem [#allocation2], 4
      %v396 = vld [vmem:[%s395] ss:$4 sm:$0x1f]
      %397 = vxpose.xlu0.b32.start [1/16] %v396, 128
      %398 = vxpose.xlu0.b32.cont [2/16] 0.0, 128
      %399 = vxpose.xlu0.b32.cont [3/16] 0.0, 128
      %400 = vxpose.xlu0.b32.cont [4/16] 0.0, 128
      %401 = vxpose.xlu0.b32.cont [5/16] 0.0, 128
      %402 = vxpose.xlu0.b32.cont [6/16] 0.0, 128
      %403 = vxpose.xlu0.b32.cont [7/16] 0.0, 128
      %404 = vxpose.xlu0.b32.cont [8/16] 0.0, 128
      %405 = vxpose.xlu0.b32.cont [9/16] 0.0, 128
      %406 = vxpose.xlu0.b32.cont [10/16] 0.0, 128
      %407 = vxpose.xlu0.b32.cont [11/16] 0.0, 128
      %408 = vxpose.xlu0.b32.cont [12/16] 0.0, 128
      %409 = vxpose.xlu0.b32.cont [13/16] 0.0, 128
      %410 = vxpose.xlu0.b32.cont [14/16] 0.0, 128
      %411 = vxpose.xlu0.b32.cont [15/16] 0.0, 128
      %412 = vxpose.xlu0.b32.end [16/16] 0.0, 128
      %v413 = vpop.trf.xlu0
      %v414 = vpop.trf.xlu0
      %v415 = vpop.trf.xlu0
      %v416 = vpop.trf.xlu0
      %v417 = vpop.trf.xlu0
      %v418 = vpop.trf.xlu0
      %v419 = vpop.trf.xlu0
      %v420 = vpop.trf.xlu0
      %v421 = vpop.trf.xlu0
      %v422 = vpop.trf.xlu0
      %v423 = vpop.trf.xlu0
      %v424 = vpop.trf.xlu0
      %v425 = vpop.trf.xlu0
      %v426 = vpop.trf.xlu0
      %v427 = vpop.trf.xlu0
      %v428 = vpop.trf.xlu0
      %v431 = vunpack.c.l.s4 1966171168
      %v432 = vunpack.c.0.s8 %v431
      %v433 = vlaneseq
      %v434 = vshrl.u32 %v433, 7
      %v435 = vsub.s32 %v432, %v434
      %v436 = vrot.slane %v413, %v435
      %v437 = vcombine.high %v436, %v436
      %v439 = vunpack.c.l.s4 1966171168
      %v440 = vunpack.c.0.s8 %v439
      %v441 = vlaneseq
      %v442 = vshrl.u32 %v441, 7
      %v443 = vsub.s32 %v440, %v442
      %v444 = vrot.slane %v436, %v443
      %v446 = vunpack.c.l.s4 1966171168
      %v447 = vunpack.c.0.s8 %v446
      %v448 = vlaneseq
      %v449 = vshrl.u32 %v448, 7
      %v450 = vsub.s32 %v447, %v449
      %v451 = vrot.slane %v437, %v450
      %v452 = vcombine.high %v444, %v444
      %v453 = vcombine.high %v451, %v451
      %458 = vst.msk [vmem:[%s116 + $0x4] sm:$0x1] %vm189, %v444
      %459 = vst.msk [vmem:[%s116 + $0xc] sm:$0x1] %vm189, %v451
      %460 = vst.msk [vmem:[%s116 + $0x14] sm:$0x1] %vm189, %v452
      %461 = vst.msk [vmem:[%s116 + $0x1c] sm:$0x1] %vm189, %v453
      %s462 = scalar_lea.vmem [#allocation2], 5
      %v463 = vld [vmem:[%s462] ss:$4 sm:$0x1f]
      %464 = vxpose.xlu0.b32.start [1/16] %v463, 128
      %465 = vxpose.xlu0.b32.cont [2/16] 0.0, 128
      %466 = vxpose.xlu0.b32.cont [3/16] 0.0, 128
      %467 = vxpose.xlu0.b32.cont [4/16] 0.0, 128
      %468 = vxpose.xlu0.b32.cont [5/16] 0.0, 128
      %469 = vxpose.xlu0.b32.cont [6/16] 0.0, 128
      %470 = vxpose.xlu0.b32.cont [7/16] 0.0, 128
      %471 = vxpose.xlu0.b32.cont [8/16] 0.0, 128
      %472 = vxpose.xlu0.b32.cont [9/16] 0.0, 128
      %473 = vxpose.xlu0.b32.cont [10/16] 0.0, 128
      %474 = vxpose.xlu0.b32.cont [11/16] 0.0, 128
      %475 = vxpose.xlu0.b32.cont [12/16] 0.0, 128
      %476 = vxpose.xlu0.b32.cont [13/16] 0.0, 128
      %477 = vxpose.xlu0.b32.cont [14/16] 0.0, 128
      %478 = vxpose.xlu0.b32.cont [15/16] 0.0, 128
      %479 = vxpose.xlu0.b32.end [16/16] 0.0, 128
      %v480 = vpop.trf.xlu0
      %v481 = vpop.trf.xlu0
      %v482 = vpop.trf.xlu0
      %v483 = vpop.trf.xlu0
      %v484 = vpop.trf.xlu0
      %v485 = vpop.trf.xlu0
      %v486 = vpop.trf.xlu0
      %v487 = vpop.trf.xlu0
      %v488 = vpop.trf.xlu0
      %v489 = vpop.trf.xlu0
      %v490 = vpop.trf.xlu0
      %v491 = vpop.trf.xlu0
      %v492 = vpop.trf.xlu0
      %v493 = vpop.trf.xlu0
      %v494 = vpop.trf.xlu0
      %v495 = vpop.trf.xlu0
      %v498 = vunpack.c.l.s4 1966171168
      %v499 = vunpack.c.0.s8 %v498
      %v500 = vlaneseq
      %v501 = vshrl.u32 %v500, 7
      %v502 = vsub.s32 %v499, %v501
      %v503 = vrot.slane %v480, %v502
      %v504 = vcombine.high %v503, %v503
      %v506 = vunpack.c.l.s4 1966171168
      %v507 = vunpack.c.0.s8 %v506
      %v508 = vlaneseq
      %v509 = vshrl.u32 %v508, 7
      %v510 = vsub.s32 %v507, %v509
      %v511 = vrot.slane %v503, %v510
      %v513 = vunpack.c.l.s4 1966171168
      %v514 = vunpack.c.0.s8 %v513
      %v515 = vlaneseq
      %v516 = vshrl.u32 %v515, 7
      %v517 = vsub.s32 %v514, %v516
      %v518 = vrot.slane %v504, %v517
      %v519 = vcombine.high %v511, %v511
      %v520 = vcombine.high %v518, %v518
      %525 = vst.msk [vmem:[%s116 + $0x5] sm:$0x1] %vm189, %v511
      %526 = vst.msk [vmem:[%s116 + $0xd] sm:$0x1] %vm189, %v518
      %527 = vst.msk [vmem:[%s116 + $0x15] sm:$0x1] %vm189, %v519
      %528 = vst.msk [vmem:[%s116 + $0x1d] sm:$0x1] %vm189, %v520
      %s529 = scalar_lea.vmem [#allocation2], 6
      %v530 = vld [vmem:[%s529] ss:$4 sm:$0x1f]
      %531 = vxpose.xlu0.b32.start [1/16] %v530, 128
      %532 = vxpose.xlu0.b32.cont [2/16] 0.0, 128
      %533 = vxpose.xlu0.b32.cont [3/16] 0.0, 128
      %534 = vxpose.xlu0.b32.cont [4/16] 0.0, 128
      %535 = vxpose.xlu0.b32.cont [5/16] 0.0, 128
      %536 = vxpose.xlu0.b32.cont [6/16] 0.0, 128
      %537 = vxpose.xlu0.b32.cont [7/16] 0.0, 128
      %538 = vxpose.xlu0.b32.cont [8/16] 0.0, 128
      %539 = vxpose.xlu0.b32.cont [9/16] 0.0, 128
      %540 = vxpose.xlu0.b32.cont [10/16] 0.0, 128
      %541 = vxpose.xlu0.b32.cont [11/16] 0.0, 128
      %542 = vxpose.xlu0.b32.cont [12/16] 0.0, 128
      %543 = vxpose.xlu0.b32.cont [13/16] 0.0, 128
      %544 = vxpose.xlu0.b32.cont [14/16] 0.0, 128
      %545 = vxpose.xlu0.b32.cont [15/16] 0.0, 128
      %546 = vxpose.xlu0.b32.end [16/16] 0.0, 128
      %v547 = vpop.trf.xlu0
      %v548 = vpop.trf.xlu0
      %v549 = vpop.trf.xlu0
      %v550 = vpop.trf.xlu0
      %v551 = vpop.trf.xlu0
      %v552 = vpop.trf.xlu0
      %v553 = vpop.trf.xlu0
      %v554 = vpop.trf.xlu0
      %v555 = vpop.trf.xlu0
      %v556 = vpop.trf.xlu0
      %v557 = vpop.trf.xlu0
      %v558 = vpop.trf.xlu0
      %v559 = vpop.trf.xlu0
      %v560 = vpop.trf.xlu0
      %v561 = vpop.trf.xlu0
      %v562 = vpop.trf.xlu0
      %v565 = vunpack.c.l.s4 1966171168
      %v566 = vunpack.c.0.s8 %v565
      %v567 = vlaneseq
      %v568 = vshrl.u32 %v567, 7
      %v569 = vsub.s32 %v566, %v568
      %v570 = vrot.slane %v547, %v569
      %v571 = vcombine.high %v570, %v570
      %v573 = vunpack.c.l.s4 1966171168
      %v574 = vunpack.c.0.s8 %v573
      %v575 = vlaneseq
      %v576 = vshrl.u32 %v575, 7
      %v577 = vsub.s32 %v574, %v576
      %v578 = vrot.slane %v570, %v577
      %v580 = vunpack.c.l.s4 1966171168
      %v581 = vunpack.c.0.s8 %v580
      %v582 = vlaneseq
      %v583 = vshrl.u32 %v582, 7
      %v584 = vsub.s32 %v581, %v583
      %v585 = vrot.slane %v571, %v584
      %v586 = vcombine.high %v578, %v578
      %v587 = vcombine.high %v585, %v585
      %592 = vst.msk [vmem:[%s116 + $0x6] sm:$0x1] %vm189, %v578
      %593 = vst.msk [vmem:[%s116 + $0xe] sm:$0x1] %vm189, %v585
      %594 = vst.msk [vmem:[%s116 + $0x16] sm:$0x1] %vm189, %v586
      %595 = vst.msk [vmem:[%s116 + $0x1e] sm:$0x1] %vm189, %v587
      %s596 = scalar_lea.vmem [#allocation2], 7
      %v597 = vld [vmem:[%s596] ss:$4 sm:$0x1f]
      %598 = vxpose.xlu0.b32.start [1/16] %v597, 128
      %599 = vxpose.xlu0.b32.cont [2/16] 0.0, 128
      %600 = vxpose.xlu0.b32.cont [3/16] 0.0, 128
      %601 = vxpose.xlu0.b32.cont [4/16] 0.0, 128
      %602 = vxpose.xlu0.b32.cont [5/16] 0.0, 128
      %603 = vxpose.xlu0.b32.cont [6/16] 0.0, 128
      %604 = vxpose.xlu0.b32.cont [7/16] 0.0, 128
      %605 = vxpose.xlu0.b32.cont [8/16] 0.0, 128
      %606 = vxpose.xlu0.b32.cont [9/16] 0.0, 128
      %607 = vxpose.xlu0.b32.cont [10/16] 0.0, 128
      %608 = vxpose.xlu0.b32.cont [11/16] 0.0, 128
      %609 = vxpose.xlu0.b32.cont [12/16] 0.0, 128
      %610 = vxpose.xlu0.b32.cont [13/16] 0.0, 128
      %611 = vxpose.xlu0.b32.cont [14/16] 0.0, 128
      %612 = vxpose.xlu0.b32.cont [15/16] 0.0, 128
      %613 = vxpose.xlu0.b32.end [16/16] 0.0, 128
      %v614 = vpop.trf.xlu0
      %v615 = vpop.trf.xlu0
      %v616 = vpop.trf.xlu0
      %v617 = vpop.trf.xlu0
      %v618 = vpop.trf.xlu0
      %v619 = vpop.trf.xlu0
      %v620 = vpop.trf.xlu0
      %v621 = vpop.trf.xlu0
      %v622 = vpop.trf.xlu0
      %v623 = vpop.trf.xlu0
      %v624 = vpop.trf.xlu0
      %v625 = vpop.trf.xlu0
      %v626 = vpop.trf.xlu0
      %v627 = vpop.trf.xlu0
      %v628 = vpop.trf.xlu0
      %v629 = vpop.trf.xlu0
      %v632 = vunpack.c.l.s4 1966171168
      %v633 = vunpack.c.0.s8 %v632
      %v634 = vlaneseq
      %v635 = vshrl.u32 %v634, 7
      %v636 = vsub.s32 %v633, %v635
      %v637 = vrot.slane %v614, %v636
      %v638 = vcombine.high %v637, %v637
      %v640 = vunpack.c.l.s4 1966171168
      %v641 = vunpack.c.0.s8 %v640
      %v642 = vlaneseq
      %v643 = vshrl.u32 %v642, 7
      %v644 = vsub.s32 %v641, %v643
      %v645 = vrot.slane %v637, %v644
      %v647 = vunpack.c.l.s4 1966171168
      %v648 = vunpack.c.0.s8 %v647
      %v649 = vlaneseq
      %v650 = vshrl.u32 %v649, 7
      %v651 = vsub.s32 %v648, %v650
      %v652 = vrot.slane %v638, %v651
      %v653 = vcombine.high %v645, %v645
      %v654 = vcombine.high %v652, %v652
      %659 = vst.msk [vmem:[%s116 + $0x7] sm:$0x1] %vm189, %v645
      %660 = vst.msk [vmem:[%s116 + $0xf] sm:$0x1] %vm189, %v652
      %661 = vst.msk [vmem:[%s116 + $0x17] sm:$0x1] %vm189, %v653
      %662 = vst.msk [vmem:[%s116 + $0x1f] sm:$0x1] %vm189, %v654
      %p663 = scmp.lt.s32.totalorder %s12, 1
      %s664 = scalar_select %p663, %s12, 1
      %s665 = smul.addr %s664, 4
      %s666 = smul.addr %s665, 8
      %s667 = scalar_lea.vmem %s1, %s666
      // Predicated region
      $region25: #{tpu_custom_call.1} parent=23 // pred_check
        %p668 = pneg %p56
      $region26: #{tpu_custom_call.1} parent=23 // pred_check_branch
        %670 = sbr.rel (%p668) target = $region28
      $region27: #{tpu_custom_call.1} parent=23 // pred_region
        _
      $region28: #{tpu_custom_call.1} parent=23 // pred_fallthru
        _
    $region24: #{tpu_custom_call.1} parent=5 // pred_fallthru
      _
    %p671 = scmp.le.s32.totalorder 2, %s7
    // Predicated region
    $region29: #{tpu_custom_call.1} parent=5 // pred_check
      %p672 = pneg %p671
    $region30: #{tpu_custom_call.1} parent=5 // pred_check_branch
      %674 = sbr.rel (%p672) target = $region32
    $region31: #{tpu_custom_call.1} parent=5 // pred_region
      %s675 = ssub.s32 %s7, 2
      // Predicated region
      $region33: #{tpu_custom_call.1} parent=31 // pred_check
        %p676 = pneg %p62
      $region34: #{tpu_custom_call.1} parent=31 // pred_check_branch
        %678 = sbr.rel (%p676) target = $region36
      $region35: #{tpu_custom_call.1} parent=31 // pred_region
        %p679 = scmp.lt.s32.totalorder %s13, 1
        %s680 = scalar_select %p679, %s13, 1
        %s681 = smul.addr %s680, 4
        %s682 = smul.addr %s681, 8
        %s683 = scalar_lea.vmem %s1, %s682
      $region36: #{tpu_custom_call.1} parent=31 // pred_fallthru
        _
    $region32: #{tpu_custom_call.1} parent=5 // pred_fallthru
      _
  $region6: #{tpu_custom_call.1} parent=0 // loop_footer
    %s11 = sadd.s32 1, %s7
  $region7: #{tpu_custom_call.1} parent=0 // loop_footer_branch
    %6 = sbr.rel target = $region3
  $region8: #{tpu_custom_call.1} parent=0 // loop_exit
    _

</llo_original>
